<compile_context>
chip_gen: v7x
topology: tpu7x:2x2x1
jax: 0.10.0
libtpu: 0.0.40
codegen_flags: <defaults>
</compile_context>

<pallas_src>
import functools
import math

import jax
import jax.numpy as jnp
from jax.experimental import pallas as pl
from jax.experimental.pallas import tpu as pltpu

# ----------------------------- model dims -----------------------------------
D_MODEL = 768            # fixed by the classification head Linear(768, 20)
N_HEADS = 12
D_HEAD = D_MODEL // N_HEADS
HEADS_PER_BLOCK = 2      # 2 * 64 = 128 -> lane-dense attention ctx blocks
D_FFN = 3072
N_LAYERS = 2
VOCAB = 128
TYPE_VOCAB = 2
MAX_POS = 64
LN_EPS = 1e-12
VMEM_LIMIT = 48 << 20    # <= 64 MiB so the same config compiles on v7x


def _pick_tile(n, candidates):
    for c in candidates:
        if n >= c and n % c == 0:
            return c
    return n


def _apply_act(y, activation):
    if activation == "gelu":
        return jax.nn.gelu(y)
    if activation == "relu":
        return jnp.maximum(y, 0.0)
    if activation == "tanh":
        return jnp.tanh(y)
    return y


def _ln_rows(y, g, b, eps):
    """Row-wise layernorm on an f32 tile (g, b broadcast over rows)."""
    mu = jnp.mean(y, axis=-1, keepdims=True)
    yc = y - mu
    var = jnp.mean(yc * yc, axis=-1, keepdims=True)
    inv = jax.lax.rsqrt(var + eps)
    return (yc * inv) * g + b


# ------------------------ fused linear (matmul+bias+act) ---------------------
def _linear_single_k_kernel(x_ref, w_ref, b_ref, o_ref, *, activation):
    # Single K step: write straight to the output, no accumulator scratch.
    y = jnp.dot(x_ref[...], w_ref[...], preferred_element_type=jnp.float32)
    y = _apply_act(y + b_ref[...], activation)
    o_ref[...] = y.astype(o_ref.dtype)


def _linear_acc_kernel(x_ref, w_ref, b_ref, o_ref, acc_ref, *, activation):
    k = pl.program_id(2)

    @pl.when(k == 0)
    def _():
        acc_ref[...] = jnp.zeros_like(acc_ref)

    acc_ref[...] += jnp.dot(x_ref[...], w_ref[...],
                            preferred_element_type=jnp.float32)

    @pl.when(k == pl.num_programs(2) - 1)
    def _():
        y = _apply_act(acc_ref[...] + b_ref[...], activation)
        o_ref[...] = y.astype(o_ref.dtype)


def linear(x, w, b, activation="none"):
    """bf16 matmul with f32 accumulation: x[M,K] @ w[K,N] + b -> bf16 [M,N]."""
    M, K = x.shape
    Kw, N = w.shape
    assert K == Kw
    tm = _pick_tile(M, (512, 384, 288, 256, 128, 64, 32, 16, 8))
    tn = _pick_tile(N, (768, 512, 384, 256, 128))
    tk = _pick_tile(K, (768, 512, 384, 256, 128))
    nk = K // tk
    b2 = b.reshape(1, N).astype(jnp.float32)

    if nk == 1:
        return pl.pallas_call(
            functools.partial(_linear_single_k_kernel, activation=activation),
            out_shape=jax.ShapeDtypeStruct((M, N), jnp.bfloat16),
            grid=(M // tm, N // tn),
            in_specs=[pl.BlockSpec((tm, K), lambda i, j: (i, 0)),
                      pl.BlockSpec((K, tn), lambda i, j: (0, j)),
                      pl.BlockSpec((1, tn), lambda i, j: (0, j))],
            out_specs=pl.BlockSpec((tm, tn), lambda i, j: (i, j)),
            compiler_params=pltpu.CompilerParams(
                dimension_semantics=("parallel", "parallel"),
                vmem_limit_bytes=VMEM_LIMIT),
        )(x, w, b2)

    return pl.pallas_call(
        functools.partial(_linear_acc_kernel, activation=activation),
        out_shape=jax.ShapeDtypeStruct((M, N), jnp.bfloat16),
        grid_spec=pltpu.PrefetchScalarGridSpec(
            num_scalar_prefetch=0,
            grid=(M // tm, N // tn, nk),
            in_specs=[pl.BlockSpec((tm, tk), lambda i, j, k: (i, k)),
                      pl.BlockSpec((tk, tn), lambda i, j, k: (k, j)),
                      pl.BlockSpec((1, tn), lambda i, j, k: (0, j))],
            out_specs=pl.BlockSpec((tm, tn), lambda i, j, k: (i, j)),
            scratch_shapes=[pltpu.VMEM((tm, tn), jnp.float32)]),
        compiler_params=pltpu.CompilerParams(
            dimension_semantics=("parallel", "parallel", "arbitrary"),
            vmem_limit_bytes=VMEM_LIMIT),
    )(x, w, b2)


# ------------------------------- layernorm -----------------------------------
def _ln_kernel(x_ref, g_ref, b_ref, o_ref, *, eps):
    x = x_ref[...].astype(jnp.float32)
    o_ref[...] = _ln_rows(x, g_ref[...], b_ref[...], eps).astype(o_ref.dtype)


def layernorm(x, g, b, eps=LN_EPS):
    M, D = x.shape
    tm = _pick_tile(M, (512, 384, 288, 256, 128, 64, 32, 16, 8))
    g2 = g.reshape(1, D).astype(jnp.float32)
    b2 = b.reshape(1, D).astype(jnp.float32)
    row_spec = pl.BlockSpec((tm, D), lambda i: (i, 0))
    vec_spec = pl.BlockSpec((1, D), lambda i: (0, 0))
    return pl.pallas_call(
        functools.partial(_ln_kernel, eps=eps),
        out_shape=jax.ShapeDtypeStruct((M, D), jnp.bfloat16),
        grid=(M // tm,),
        in_specs=[row_spec, vec_spec, vec_spec],
        out_specs=row_spec,
        compiler_params=pltpu.CompilerParams(
            dimension_semantics=("parallel",)),
    )(x, g2, b2)


# ------------- fused: linear(K=768) + bias + residual + layernorm ------------
def _linear_res_ln_kernel(x_ref, w_ref, b_ref, r_ref, g_ref, beta_ref, o_ref,
                          *, eps):
    y = jnp.dot(x_ref[...], w_ref[...], preferred_element_type=jnp.float32)
    y = y + b_ref[...] + r_ref[...].astype(jnp.float32)
    o_ref[...] = _ln_rows(y, g_ref[...], beta_ref[...], eps).astype(o_ref.dtype)


def linear_residual_layernorm(x, w, b, residual, g, beta, eps=LN_EPS):
    """LN(x @ w + b + residual): one kernel, no intermediate HBM write."""
    M, K = x.shape
    Kw, N = w.shape
    assert K == Kw
    tm = _pick_tile(M, (512, 384, 288, 256, 128, 64, 32, 16, 8))
    b2 = b.reshape(1, N).astype(jnp.float32)
    g2 = g.reshape(1, N).astype(jnp.float32)
    beta2 = beta.reshape(1, N).astype(jnp.float32)
    row_spec = pl.BlockSpec((tm, N), lambda i: (i, 0))
    return pl.pallas_call(
        functools.partial(_linear_res_ln_kernel, eps=eps),
        out_shape=jax.ShapeDtypeStruct((M, N), jnp.bfloat16),
        grid=(M // tm,),
        in_specs=[pl.BlockSpec((tm, K), lambda i: (i, 0)),
                  pl.BlockSpec((K, N), lambda i: (0, 0)),
                  pl.BlockSpec((1, N), lambda i: (0, 0)),
                  row_spec,
                  pl.BlockSpec((1, N), lambda i: (0, 0)),
                  pl.BlockSpec((1, N), lambda i: (0, 0))],
        out_specs=row_spec,
        compiler_params=pltpu.CompilerParams(
            dimension_semantics=("parallel",),
            vmem_limit_bytes=VMEM_LIMIT),
    )(x, w, b2, residual, g2, beta2)


# -------- fused FFN: gelu(x@W1+b1)@W2 + b2 + residual + layernorm -------------
def _ffn_ln_kernel(x_ref, w1_ref, b1_ref, w2_ref, b2_ref, r_ref, g_ref,
                   beta_ref, o_ref, acc_ref, *, eps):
    f = pl.program_id(1)

    @pl.when(f == 0)
    def _():
        acc_ref[...] = jnp.zeros_like(acc_ref)

    h = jnp.dot(x_ref[...], w1_ref[...], preferred_element_type=jnp.float32)
    h = jax.nn.gelu(h + b1_ref[...])
    acc_ref[...] += jnp.dot(h.astype(jnp.bfloat16), w2_ref[...],
                            preferred_element_type=jnp.float32)

    @pl.when(f == pl.num_programs(1) - 1)
    def _():
        y = acc_ref[...] + b2_ref[...] + r_ref[...].astype(jnp.float32)
        o_ref[...] = _ln_rows(y, g_ref[...], beta_ref[...], eps).astype(o_ref.dtype)


def ffn_layernorm(x, w1, b1, w2, b2, g, beta, eps=LN_EPS):
    """LN(gelu(x@W1+b1)@W2 + b2 + x): the [M, D_FFN] intermediate never hits HBM."""
    M, D = x.shape
    assert w1.shape == (D, D_FFN) and w2.shape == (D_FFN, D)
    tm = _pick_tile(M, (512, 384, 288, 256, 128, 64, 32, 16, 8))
    tf = _pick_tile(D_FFN, (768, 512, 384, 256, 128))
    nf = D_FFN // tf
    b1v = b1.reshape(1, D_FFN).astype(jnp.float32)
    b2v = b2.reshape(1, D).astype(jnp.float32)
    g2 = g.reshape(1, D).astype(jnp.float32)
    beta2 = beta.reshape(1, D).astype(jnp.float32)
    row_spec = pl.BlockSpec((tm, D), lambda i, f: (i, 0))
    vec_spec = pl.BlockSpec((1, D), lambda i, f: (0, 0))
    return pl.pallas_call(
        functools.partial(_ffn_ln_kernel, eps=eps),
        out_shape=jax.ShapeDtypeStruct((M, D), jnp.bfloat16),
        grid_spec=pltpu.PrefetchScalarGridSpec(
            num_scalar_prefetch=0,
            grid=(M // tm, nf),
            in_specs=[row_spec,                                        # x
                      pl.BlockSpec((D, tf), lambda i, f: (0, f)),      # w1 chunk
                      pl.BlockSpec((1, tf), lambda i, f: (0, f)),      # b1 chunk
                      pl.BlockSpec((tf, D), lambda i, f: (f, 0)),      # w2 chunk
                      vec_spec,                                        # b2
                      row_spec,                                        # residual
                      vec_spec, vec_spec],                             # gamma, beta
            out_specs=row_spec,
            scratch_shapes=[pltpu.VMEM((tm, D), jnp.float32)]),
        compiler_params=pltpu.CompilerParams(
            dimension_semantics=("parallel", "arbitrary"),
            vmem_limit_bytes=VMEM_LIMIT),
    )(x, w1, b1v, w2, b2v, x, g2, beta2)


# ------------------------- multi-head self attention -------------------------
def _attn_kernel(q_ref, k_ref, v_ref, m_ref, p_ref, c_ref, *, scale):
    # q/k/v blocks: (1, S, HEADS_PER_BLOCK*D_HEAD) bf16 (head-contiguous cols)
    # m block: (1, 1, S) f32; p block: (1, HEADS_PER_BLOCK, S, S) f32
    # c block: (1, S, HEADS_PER_BLOCK*D_HEAD) bf16
    q = q_ref[0] * scale                        # 0.125 is exact in bf16
    k = k_ref[0]
    v = v_ref[0]
    bias = (1.0 - m_ref[0]) * (-1e9)            # (1, S), broadcasts over queries
    ctx_parts = []
    for hh in range(HEADS_PER_BLOCK):
        lo = hh * D_HEAD
        qh = jax.lax.slice_in_dim(q, lo, lo + D_HEAD, axis=1)
        kh = jax.lax.slice_in_dim(k, lo, lo + D_HEAD, axis=1)
        vh = jax.lax.slice_in_dim(v, lo, lo + D_HEAD, axis=1)
        s = jax.lax.dot_general(qh, kh, (((1,), (1,)), ((), ())),
                                preferred_element_type=jnp.float32)   # (S, S)
        s = s + bias
        mx = jnp.max(s, axis=-1, keepdims=True)
        e = jnp.exp(s - mx)
        denom = jnp.sum(e, axis=-1, keepdims=True)
        probs = e * pl.reciprocal(denom, approx=False)
        p_ref[0, hh] = probs                     # post-softmax attention probs
        ctx_parts.append(jnp.dot(probs.astype(jnp.bfloat16), vh,
                                 preferred_element_type=jnp.float32))
    # single lane-dense (S, 128) store instead of two masked 64-wide stores
    c_ref[0] = jnp.concatenate(ctx_parts, axis=-1).astype(c_ref.dtype)


def multihead_attention(qkv, mask_b, B, S):
    """qkv: [B, S, 3*D_MODEL] bf16 (fused Q|K|V columns), mask_b: [B, 1, S] f32."""
    hb = HEADS_PER_BLOCK
    nb = N_HEADS // hb
    blk = hb * D_HEAD
    scale = 1.0 / math.sqrt(D_HEAD)
    probs, ctx = pl.pallas_call(
        functools.partial(_attn_kernel, scale=scale),
        out_shape=(jax.ShapeDtypeStruct((B, N_HEADS, S, S), jnp.float32),
                   jax.ShapeDtypeStruct((B, S, D_MODEL), jnp.bfloat16)),
        grid=(B, nb),
        in_specs=[pl.BlockSpec((1, S, blk), lambda b, h: (b, 0, h)),
                  pl.BlockSpec((1, S, blk), lambda b, h: (b, 0, nb + h)),
                  pl.BlockSpec((1, S, blk), lambda b, h: (b, 0, 2 * nb + h)),
                  pl.BlockSpec((1, 1, S), lambda b, h: (b, 0, 0))],
        out_specs=[pl.BlockSpec((1, hb, S, S), lambda b, h: (b, h, 0, 0)),
                   pl.BlockSpec((1, S, blk), lambda b, h: (b, 0, h))],
        compiler_params=pltpu.CompilerParams(
            dimension_semantics=("parallel", "parallel"),
            vmem_limit_bytes=VMEM_LIMIT),
    )(qkv, qkv, qkv, mask_b)
    return probs, ctx


# ------------------------------ parameters -----------------------------------
def init_params(key):
    def dense(key, shape, dtype=jnp.bfloat16):
        return (0.02 * jax.random.normal(key, shape, dtype=jnp.float32)).astype(dtype)

    keys = iter(jax.random.split(key, 64))
    p = {
        "word_emb": dense(next(keys), (VOCAB, D_MODEL), jnp.float32),
        "pos_emb": dense(next(keys), (MAX_POS, D_MODEL), jnp.float32),
        "type_emb": dense(next(keys), (TYPE_VOCAB, D_MODEL), jnp.float32),
        "emb_ln_g": jnp.ones((D_MODEL,), jnp.float32),
        "emb_ln_b": jnp.zeros((D_MODEL,), jnp.float32),
        "layers": [],
        "pool_w": dense(next(keys), (D_MODEL, D_MODEL), jnp.float32),
        "pool_b": jnp.zeros((D_MODEL,), jnp.float32),
        # classification head: Linear(768,20) -> Dropout -> ReLU -> Linear(20,2)
        "cls_w1": dense(next(keys), (D_MODEL, 20), jnp.float32),
        "cls_b1": jnp.zeros((20,), jnp.float32),
        "cls_w2": dense(next(keys), (20, 2), jnp.float32),
        "cls_b2": jnp.zeros((2,), jnp.float32),
    }
    for _ in range(N_LAYERS):
        layer = {
            # fused QKV weight (= concat([wq, wk, wv], axis=1)), stored bf16
            "w_qkv": dense(next(keys), (D_MODEL, 3 * D_MODEL)),
            "b_qkv": jnp.zeros((3 * D_MODEL,), jnp.float32),
            "wo": dense(next(keys), (D_MODEL, D_MODEL)),
            "bo": jnp.zeros((D_MODEL,), jnp.float32),
            "attn_ln_g": jnp.ones((D_MODEL,), jnp.float32),
            "attn_ln_b": jnp.zeros((D_MODEL,), jnp.float32),
            "w_ffn1": dense(next(keys), (D_MODEL, D_FFN)),
            "b_ffn1": jnp.zeros((D_FFN,), jnp.float32),
            "w_ffn2": dense(next(keys), (D_FFN, D_MODEL)),
            "b_ffn2": jnp.zeros((D_MODEL,), jnp.float32),
            "ffn_ln_g": jnp.ones((D_MODEL,), jnp.float32),
            "ffn_ln_b": jnp.zeros((D_MODEL,), jnp.float32),
        }
        p["layers"].append(layer)
    return p


# ------------------------------- forward -------------------------------------
def dnabert2_forward(params, input_ids, token_type_ids, attention_mask):
    B, S = input_ids.shape
    # embeddings (gathers are XLA glue)
    emb = (params["word_emb"][input_ids]
           + params["pos_emb"][None, :S, :]
           + params["type_emb"][token_type_ids])
    x = layernorm(emb.reshape(B * S, D_MODEL).astype(jnp.float32),
                  params["emb_ln_g"], params["emb_ln_b"])          # bf16 [B*S, 768]

    mask_b = attention_mask.astype(jnp.float32).reshape(B, 1, S)

    all_weights, all_probs = [], []
    for layer in params["layers"]:
        # fused Q/K/V projection: x is read from HBM once
        qkv = linear(x, layer["w_qkv"], layer["b_qkv"])            # [B*S, 2304]
        probs, ctx = multihead_attention(
            qkv.reshape(B, S, 3 * D_MODEL), mask_b, B, S)
        # eval-mode attention dropout is identity -> weights == probs (HF
        # returns post-softmax probabilities as attention weights).
        all_weights.append(probs)
        all_probs.append(probs)

        # fused: ctx @ Wo + bo + residual -> layernorm (single kernel)
        x = linear_residual_layernorm(ctx.reshape(B * S, D_MODEL),
                                      layer["wo"], layer["bo"], x,
                                      layer["attn_ln_g"], layer["attn_ln_b"])

        # fused FFN: gelu(x@W1+b1)@W2 + b2 + residual -> layernorm (single
        # kernel; the 3072-wide intermediate never leaves VMEM)
        x = ffn_layernorm(x, layer["w_ffn1"], layer["b_ffn1"],
                          layer["w_ffn2"], layer["b_ffn2"],
                          layer["ffn_ln_g"], layer["ffn_ln_b"])

    # BERT pooler + classification head: tiny GEMMs (N=20 / N=2, M=B) are
    # cheaper as plain jnp.dot than as masked-store Pallas launches.
    cls = x.reshape(B, S, D_MODEL)[:, 0, :].astype(jnp.float32)    # [B, 768]
    representation = jnp.tanh(cls @ params["pool_w"] + params["pool_b"])
    h = jnp.maximum(representation @ params["cls_w1"] + params["cls_b1"], 0.0)
    # TODO(synk): Dropout(0.5) treated as identity (eval semantics).
    output = h @ params["cls_w2"] + params["cls_b2"]               # [B, 2]

    return output, representation, all_weights, all_probs


# --------------------------------- main --------------------------------------
if __name__ == "__main__":
    B, S = 2, 16     # small stand-in for (batch, tokenlen=864)
    key = jax.random.PRNGKey(0)
    kp, kid = jax.random.split(key, 2)

    params = init_params(kp)
    input_ids = jax.random.randint(kid, (B, S), 0, VOCAB, dtype=jnp.int32)
    token_type_ids = jnp.zeros((B, S), dtype=jnp.int32)
    # make the last 3 positions of example 1 padding to exercise the mask
    attention_mask = jnp.ones((B, S), dtype=jnp.int32).at[1, -3:].set(0)

    output, representation, all_w, all_p = dnabert2_forward(
        params, input_ids, token_type_ids, attention_mask)

    jax.block_until_ready(output)
    jax.block_until_ready(representation)
    jax.block_until_ready(all_w[-1])
    jax.block_until_ready(all_p[-1])

    assert output.shape == (B, 2)
    assert representation.shape == (B, D_MODEL)
    assert all_w[0].shape == (B, N_HEADS, S, S)
    assert all_p[0].shape == (B, N_HEADS, S, S)
    assert bool(jnp.all(jnp.isfinite(output)))
    print("KERNEL_OK")
</pallas_src>

<mosaic_0001>
module attributes {stable_mosaic.version = 11 : i64} {
  func.func @_ln_kernel(%arg0: i32, %arg1: memref<32x768xf32, #tpu.memory_space<vmem>>, %arg2: memref<1x768xf32, #tpu.memory_space<vmem>>, %arg3: memref<1x768xf32, #tpu.memory_space<vmem>>, %arg4: memref<32x768xbf16, #tpu.memory_space<vmem>>) attributes {dimension_semantics = [#tpu.dimension_semantics<parallel>], iteration_bounds = array<i64: 1>, scalar_prefetch = 0 : i64, scratch_operands = 0 : i64, tpu.core_type = #tpu.core_type<tc>, window_params = [{transform_indices = @transform_0, window_bounds = array<i64: 32, 768>}, {pipeline_mode = #tpu.pipeline_mode<synchronous>, transform_indices = @transform_1, window_bounds = array<i64: 1, 768>}, {pipeline_mode = #tpu.pipeline_mode<synchronous>, transform_indices = @transform_2, window_bounds = array<i64: 1, 768>}, {transform_indices = @transform_3, window_bounds = array<i64: 32, 768>}]} {
    %c0 = arith.constant 0 : index
    %c0_0 = arith.constant 0 : index
    %0 = vector.load %arg1[%c0, %c0_0] : memref<32x768xf32, #tpu.memory_space<vmem>>, vector<32x768xf32>
    %c0_1 = arith.constant 0 : index
    %c0_2 = arith.constant 0 : index
    %1 = vector.load %arg2[%c0_1, %c0_2] : memref<1x768xf32, #tpu.memory_space<vmem>>, vector<1x768xf32>
    %c0_3 = arith.constant 0 : index
    %c0_4 = arith.constant 0 : index
    %2 = vector.load %arg3[%c0_3, %c0_4] : memref<1x768xf32, #tpu.memory_space<vmem>>, vector<1x768xf32>
    %cst = arith.constant dense<0.000000e+00> : vector<32xf32>
    %3 = vector.multi_reduction <add>, %0, %cst [1] : vector<32x768xf32> to vector<32xf32>
    %4 = vector.shape_cast %3 : vector<32xf32> to vector<32x1xf32>
    %cst_5 = arith.constant 7.680000e+02 : f32
    %5 = vector.broadcast %cst_5 : f32 to vector<32x1xf32>
    %6 = arith.divf %4, %5 : vector<32x1xf32>
    %7 = vector.broadcast %6 : vector<32x1xf32> to vector<32x768xf32>
    %8 = arith.subf %0, %7 : vector<32x768xf32>
    %9 = arith.mulf %8, %8 : vector<32x768xf32>
    %cst_6 = arith.constant dense<0.000000e+00> : vector<32xf32>
    %10 = vector.multi_reduction <add>, %9, %cst_6 [1] : vector<32x768xf32> to vector<32xf32>
    %11 = vector.shape_cast %10 : vector<32xf32> to vector<32x1xf32>
    %cst_7 = arith.constant 7.680000e+02 : f32
    %12 = vector.broadcast %cst_7 : f32 to vector<32x1xf32>
    %13 = arith.divf %11, %12 : vector<32x1xf32>
    %cst_8 = arith.constant 9.99999996E-13 : f32
    %14 = vector.broadcast %cst_8 : f32 to vector<32x1xf32>
    %15 = arith.addf %13, %14 : vector<32x1xf32>
    %16 = math.rsqrt %15 : vector<32x1xf32>
    %17 = vector.broadcast %16 : vector<32x1xf32> to vector<32x768xf32>
    %18 = arith.mulf %8, %17 : vector<32x768xf32>
    %19 = vector.broadcast %1 : vector<1x768xf32> to vector<32x768xf32>
    %20 = arith.mulf %18, %19 : vector<32x768xf32>
    %21 = vector.broadcast %2 : vector<1x768xf32> to vector<32x768xf32>
    %22 = arith.addf %20, %21 : vector<32x768xf32>
    %23 = arith.truncf %22 : vector<32x768xf32> to vector<32x768xbf16>
    %c0_9 = arith.constant 0 : index
    %c0_10 = arith.constant 0 : index
    %24 = vector.load %arg4[%c0_9, %c0_10] : memref<32x768xbf16, #tpu.memory_space<vmem>>, vector<32x768xbf16>
    tpu.vector_store %arg4[%c0_9, %c0_10], %23 {strides = array<i32>} : memref<32x768xbf16, #tpu.memory_space<vmem>>, vector<32x768xbf16>,
    return
  }
  func.func @transform_0(%arg0: i32) -> (i32, i32) {
    %c0_i32 = arith.constant 0 : i32
    %c0_i32_0 = arith.constant 0 : i32
    return %arg0, %c0_i32 : i32, i32
  }
  func.func @transform_1(%arg0: i32) -> (i32, i32) {
    %c0_i32 = arith.constant 0 : i32
    %c0_i32_0 = arith.constant 0 : i32
    %c0_i32_1 = arith.constant 0 : i32
    return %c0_i32, %c0_i32_0 : i32, i32
  }
  func.func @transform_2(%arg0: i32) -> (i32, i32) {
    %c0_i32 = arith.constant 0 : i32
    %c0_i32_0 = arith.constant 0 : i32
    %c0_i32_1 = arith.constant 0 : i32
    return %c0_i32, %c0_i32_0 : i32, i32
  }
  func.func @transform_3(%arg0: i32) -> (i32, i32) {
    %c0_i32 = arith.constant 0 : i32
    %c0_i32_0 = arith.constant 0 : i32
    return %arg0, %c0_i32 : i32, i32
  }
}

</mosaic_0001>

<llo_original>
// kernel: tpu_custom_call.1
$region0: #{tpu_custom_call.1}
  #allocation0 [shape = 'u32[]', space=smem, size = 0x4, offset = 0x4, fixed_abs, tag = 'smem constant byte address 0x4 - core index']
  #allocation1 [shape = 'u32[144,128]{1,0:T(1,128)}', space=vmem, size = 0x12000, scoped, tag = 'internal scratch']
  %s0 = inlined_call_operand.hbm [shape: f32[32,768], index: 0, kind: input, shape index: {}]
  %s1 = inlined_call_operand.hbm [shape: f32[1,768], index: 1, kind: input, shape index: {}]
  %s2 = inlined_call_operand.vmem [shape: f32[1,768], index: 2, kind: input, shape index: {}]
  %s3 = inlined_call_operand.hbm [shape: bf16[32,768], index: 3, kind: output, shape index: {}]
  %s4 = sld [smem:[#allocation0]]
  $region30: #{tpu_custom_call.1} parent=0
    _
  %s6 = ssub.s32 1, %s4
  %s7 = scalar_select 0, %s6, %s4
  $region1: #{tpu_custom_call.1} parent=0
    #allocation2 [shape = 'u8[98304]{0}', space=vmem, size = 0x18000, scoped, tag = 'input window, operand 0, single buffered']
    #allocation3 [shape = 's32[1]{0}', space=sflag, size = 0x4, scoped, tag = 'scoped memory for tpu_custom_call.1']
    #allocation4 [shape = 's32[1]{0}', space=sflag, size = 0x4, scoped, tag = 'scoped memory for tpu_custom_call.1']
    #allocation5 [shape = 'u8[3072]{0}', space=vmem, size = 0xc00, scoped, tag = 'input window, operand 1, single buffered']
    #allocation6 [shape = 's32[1]{0}', space=sflag, size = 0x4, scoped, tag = 'scoped memory for tpu_custom_call.1']
    #allocation7 [shape = 'u8[49152]{0}', space=vmem, size = 0xc000, scoped, tag = 'output window, operand 0, single buffered']
    %8 = vsyncpa [#allocation3], 0
    %9 = vsyncpa [#allocation6], 0
    %10 = vsyncpa [#allocation4], 0
    // Predicated region
    $region2: #{tpu_custom_call.1} parent=1 // pred_check
      _
    $region3: #{tpu_custom_call.1} parent=1 // pred_check_branch
      %12 = sbr.rel (0) target = $region5
    $region4: #{tpu_custom_call.1} parent=1 // pred_region
      %s14 = ssub.s32 3072, 3072
      %15 = vsyncadd [#allocation3], %s14
      %s16 = sshll.u32 [#allocation2], 4
      %s17 = int_to_ptr.vmem [resolvable:$true] %s16
      %22 = dma.hbm_to_vmem [thread:$0]  %s0, 3072, %s17, [#allocation3], 768, 768, 48
    $region5: #{tpu_custom_call.1} parent=1 // pred_fallthru
      _
    // Predicated region
    $region6: #{tpu_custom_call.1} parent=1 // pred_check
      _
    $region7: #{tpu_custom_call.1} parent=1 // pred_check_branch
      %24 = sbr.rel (0) target = $region9
    $region8: #{tpu_custom_call.1} parent=1 // pred_region
      %s26 = ssub.s32 96, 96
      %27 = vsyncadd [#allocation6], %s26
      %s29 = sshll.u32 [#allocation5], 4
      %s30 = int_to_ptr.vmem [resolvable:$true] %s29
      %32 = dma.hbm_to_vmem [thread:$0]  %s1, 96, %s30, [#allocation6]
    $region9: #{tpu_custom_call.1} parent=1 // pred_fallthru
      _
    // Predicated region
    $region10: #{tpu_custom_call.1} parent=1 // pred_check
      _
    $region11: #{tpu_custom_call.1} parent=1 // pred_check_branch
      %34 = sbr.rel (0) target = $region13
    $region12: #{tpu_custom_call.1} parent=1 // pred_region
      _
    $region13: #{tpu_custom_call.1} parent=1 // pred_fallthru
      _
    // Predicated region
    $region14: #{tpu_custom_call.1} parent=1 // pred_check
      _
    $region15: #{tpu_custom_call.1} parent=1 // pred_check_branch
      %36 = sbr.rel (0) target = $region17
    $region16: #{tpu_custom_call.1} parent=1 // pred_region
      %37 = dma.done [#allocation3], 3072
    $region17: #{tpu_custom_call.1} parent=1 // pred_fallthru
      _
    // Predicated region
    $region18: #{tpu_custom_call.1} parent=1 // pred_check
      _
    $region19: #{tpu_custom_call.1} parent=1 // pred_check_branch
      %39 = sbr.rel (0) target = $region21
    $region20: #{tpu_custom_call.1} parent=1 // pred_region
      %40 = dma.done [#allocation6], 96
    $region21: #{tpu_custom_call.1} parent=1 // pred_fallthru
      _
    %v41 = vld [vmem:[#allocation2] sm:$0xff]
    %v42 = vld [vmem:[#allocation2 + $0x8] sm:$0xff]
    %v43 = vld [vmem:[#allocation2 + $0x10] sm:$0xff]
    %v44 = vld [vmem:[#allocation2 + $0x18] sm:$0xff]
    %v45 = vld [vmem:[#allocation2 + $0x20] sm:$0xff]
    %v46 = vld [vmem:[#allocation2 + $0x28] sm:$0xff]
    %v47 = vld [vmem:[#allocation2 + $0x30] sm:$0xff]
    %v48 = vld [vmem:[#allocation2 + $0x38] sm:$0xff]
    %v49 = vld [vmem:[#allocation2 + $0x40] sm:$0xff]
    %v50 = vld [vmem:[#allocation2 + $0x48] sm:$0xff]
    %v51 = vld [vmem:[#allocation2 + $0x50] sm:$0xff]
    %v52 = vld [vmem:[#allocation2 + $0x58] sm:$0xff]
    %v53 = vld [vmem:[#allocation2 + $0x60] sm:$0xff]
    %v54 = vld [vmem:[#allocation2 + $0x68] sm:$0xff]
    %v55 = vld [vmem:[#allocation2 + $0x70] sm:$0xff]
    %v56 = vld [vmem:[#allocation2 + $0x78] sm:$0xff]
    %v57 = vld [vmem:[#allocation2 + $0x80] sm:$0xff]
    %v58 = vld [vmem:[#allocation2 + $0x88] sm:$0xff]
    %v59 = vld [vmem:[#allocation2 + $0x90] sm:$0xff]
    %v60 = vld [vmem:[#allocation2 + $0x98] sm:$0xff]
    %v61 = vld [vmem:[#allocation2 + $0xa0] sm:$0xff]
    %v62 = vld [vmem:[#allocation2 + $0xa8] sm:$0xff]
    %v63 = vld [vmem:[#allocation2 + $0xb0] sm:$0xff]
    %v64 = vld [vmem:[#allocation2 + $0xb8] sm:$0xff]
    %v65 = vld [vmem:[#allocation5] sm:$0x3f]
    %v66 = vld [vmem:[%s2] sm:$0x3f]
    %v67 = vadd.f32 %v41, %v42
    %v68 = vadd.f32 %v67, %v43
    %v69 = vadd.f32 %v68, %v44
    %v70 = vadd.f32 %v69, %v45
    %v71 = vadd.f32 %v70, %v46
    %72 = vadd.xlane.f32.xlu0 %v71
    %v73 = vpop.xlane.xlu0 %72
    %v74 = vadd.f32 %v47, %v48
    %v75 = vadd.f32 %v74, %v49
    %v76 = vadd.f32 %v75, %v50
    %v77 = vadd.f32 %v76, %v51
    %v78 = vadd.f32 %v77, %v52
    %79 = vadd.xlane.f32.xlu0 %v78
    %v80 = vpop.xlane.xlu0 %79
    %v81 = vadd.f32 %v53, %v54
    %v82 = vadd.f32 %v81, %v55
    %v83 = vadd.f32 %v82, %v56
    %v84 = vadd.f32 %v83, %v57
    %v85 = vadd.f32 %v84, %v58
    %86 = vadd.xlane.f32.xlu0 %v85
    %v87 = vpop.xlane.xlu0 %86
    %v88 = vadd.f32 %v59, %v60
    %v89 = vadd.f32 %v88, %v61
    %v90 = vadd.f32 %v89, %v62
    %v91 = vadd.f32 %v90, %v63
    %v92 = vadd.f32 %v91, %v64
    %93 = vadd.xlane.f32.xlu0 %v92
    %v94 = vpop.xlane.xlu0 %93
    %v95 = vrcp.pop 768.0
    %v96 = vmul.f32 %v73, %v95
    %v97 = vmul.f32 %v80, %v95
    %v98 = vmul.f32 %v87, %v95
    %v99 = vmul.f32 %v94, %v95
    %v100 = vsub.f32 %v41, %v96
    %v101 = vsub.f32 %v42, %v96
    %v102 = vsub.f32 %v43, %v96
    %v103 = vsub.f32 %v44, %v96
    %v104 = vsub.f32 %v45, %v96
    %v105 = vsub.f32 %v46, %v96
    %v106 = vsub.f32 %v47, %v97
    %v107 = vsub.f32 %v48, %v97
    %v108 = vsub.f32 %v49, %v97
    %v109 = vsub.f32 %v50, %v97
    %v110 = vsub.f32 %v51, %v97
    %v111 = vsub.f32 %v52, %v97
    %v112 = vsub.f32 %v53, %v98
    %v113 = vsub.f32 %v54, %v98
    %v114 = vsub.f32 %v55, %v98
    %v115 = vsub.f32 %v56, %v98
    %v116 = vsub.f32 %v57, %v98
    %v117 = vsub.f32 %v58, %v98
    %v118 = vsub.f32 %v59, %v99
    %v119 = vsub.f32 %v60, %v99
    %v120 = vsub.f32 %v61, %v99
    %v121 = vsub.f32 %v62, %v99
    %v122 = vsub.f32 %v63, %v99
    %v123 = vsub.f32 %v64, %v99
    %v124 = vmul.f32 %v100, %v100
    %v125 = vmul.f32 %v101, %v101
    %v126 = vmul.f32 %v102, %v102
    %v127 = vmul.f32 %v103, %v103
    %v128 = vmul.f32 %v104, %v104
    %v129 = vmul.f32 %v105, %v105
    %v130 = vmul.f32 %v106, %v106
    %v131 = vmul.f32 %v107, %v107
    %v132 = vmul.f32 %v108, %v108
    %v133 = vmul.f32 %v109, %v109
    %v134 = vmul.f32 %v110, %v110
    %v135 = vmul.f32 %v111, %v111
    %v136 = vmul.f32 %v112, %v112
    %v137 = vmul.f32 %v113, %v113
    %v138 = vmul.f32 %v114, %v114
    %v139 = vmul.f32 %v115, %v115
    %v140 = vmul.f32 %v116, %v116
    %v141 = vmul.f32 %v117, %v117
    %v142 = vmul.f32 %v118, %v118
    %v143 = vmul.f32 %v119, %v119
    %v144 = vmul.f32 %v120, %v120
    %v145 = vmul.f32 %v121, %v121
    %v146 = vmul.f32 %v122, %v122
    %v147 = vmul.f32 %v123, %v123
    %v148 = vadd.f32 %v124, %v125
    %v149 = vadd.f32 %v148, %v126
    %v150 = vadd.f32 %v149, %v127
    %v151 = vadd.f32 %v150, %v128
    %v152 = vadd.f32 %v151, %v129
    %153 = vadd.xlane.f32.xlu0 %v152
    %v154 = vpop.xlane.xlu0 %153
    %v155 = vadd.f32 %v130, %v131
    %v156 = vadd.f32 %v155, %v132
    %v157 = vadd.f32 %v156, %v133
    %v158 = vadd.f32 %v157, %v134
    %v159 = vadd.f32 %v158, %v135
    %160 = vadd.xlane.f32.xlu0 %v159
    %v161 = vpop.xlane.xlu0 %160
    %v162 = vadd.f32 %v136, %v137
    %v163 = vadd.f32 %v162, %v138
    %v164 = vadd.f32 %v163, %v139
    %v165 = vadd.f32 %v164, %v140
    %v166 = vadd.f32 %v165, %v141
    %167 = vadd.xlane.f32.xlu0 %v166
    %v168 = vpop.xlane.xlu0 %167
    %v169 = vadd.f32 %v142, %v143
    %v170 = vadd.f32 %v169, %v144
    %v171 = vadd.f32 %v170, %v145
    %v172 = vadd.f32 %v171, %v146
    %v173 = vadd.f32 %v172, %v147
    %174 = vadd.xlane.f32.xlu0 %v173
    %v175 = vpop.xlane.xlu0 %174
    %v176 = vmul.f32 %v154, %v95
    %v177 = vmul.f32 %v161, %v95
    %v178 = vmul.f32 %v168, %v95
    %v179 = vmul.f32 %v175, %v95
    %v180 = vadd.f32 %v176, 1e-12
    %v181 = vadd.f32 %v177, 1e-12
    %v182 = vadd.f32 %v178, 1e-12
    %v183 = vadd.f32 %v179, 1e-12
    %v184 = vrsqrt.pop %v180
    %v185 = vrsqrt.pop %v181
    %v186 = vrsqrt.pop %v182
    %v187 = vrsqrt.pop %v183
    %v188 = vmul.f32 %v100, %v184
    %v189 = vmul.f32 %v101, %v184
    %v190 = vmul.f32 %v102, %v184
    %v191 = vmul.f32 %v103, %v184
    %v192 = vmul.f32 %v104, %v184
    %v193 = vmul.f32 %v105, %v184
    %v194 = vmul.f32 %v106, %v185
    %v195 = vmul.f32 %v107, %v185
    %v196 = vmul.f32 %v108, %v185
    %v197 = vmul.f32 %v109, %v185
    %v198 = vmul.f32 %v110, %v185
    %v199 = vmul.f32 %v111, %v185
    %v200 = vmul.f32 %v112, %v186
    %v201 = vmul.f32 %v113, %v186
    %v202 = vmul.f32 %v114, %v186
    %v203 = vmul.f32 %v115, %v186
    %v204 = vmul.f32 %v116, %v186
    %v205 = vmul.f32 %v117, %v186
    %v206 = vmul.f32 %v118, %v187
    %v207 = vmul.f32 %v119, %v187
    %v208 = vmul.f32 %v120, %v187
    %v209 = vmul.f32 %v121, %v187
    %v210 = vmul.f32 %v122, %v187
    %v211 = vmul.f32 %v123, %v187
    %v213 = vlaneseq
    %v214 = vshrl.u32 %v213, 7
    %v215 = vsub.s32 0, %v214
    %v216 = vrot.slane %v65, %v215
    %v217 = vlaneseq
    %v218 = vshrl.u32 %v217, 7
    %v219 = vsub.s32 1, %v218
    %v220 = vrot.slane %v65, %v219
    %v221 = vlaneseq
    %v222 = vshrl.u32 %v221, 7
    %v223 = vsub.s32 2, %v222
    %v224 = vrot.slane %v65, %v223
    %v225 = vlaneseq
    %v226 = vshrl.u32 %v225, 7
    %v227 = vsub.s32 3, %v226
    %v228 = vrot.slane %v65, %v227
    %v229 = vlaneseq
    %v230 = vshrl.u32 %v229, 7
    %v231 = vsub.s32 4, %v230
    %v232 = vrot.slane %v65, %v231
    %v233 = vlaneseq
    %v234 = vshrl.u32 %v233, 7
    %v235 = vsub.s32 5, %v234
    %v236 = vrot.slane %v65, %v235
    %v243 = vmul.f32 %v188, %v216
    %v244 = vmul.f32 %v189, %v220
    %v245 = vmul.f32 %v190, %v224
    %v246 = vmul.f32 %v191, %v228
    %v247 = vmul.f32 %v192, %v232
    %v248 = vmul.f32 %v193, %v236
    %v249 = vmul.f32 %v194, %v216
    %v250 = vmul.f32 %v195, %v220
    %v251 = vmul.f32 %v196, %v224
    %v252 = vmul.f32 %v197, %v228
    %v253 = vmul.f32 %v198, %v232
    %v254 = vmul.f32 %v199, %v236
    %v255 = vmul.f32 %v200, %v216
    %v256 = vmul.f32 %v201, %v220
    %v257 = vmul.f32 %v202, %v224
    %v258 = vmul.f32 %v203, %v228
    %v259 = vmul.f32 %v204, %v232
    %v260 = vmul.f32 %v205, %v236
    %v261 = vmul.f32 %v206, %v216
    %v262 = vmul.f32 %v207, %v220
    %v263 = vmul.f32 %v208, %v224
    %v264 = vmul.f32 %v209, %v228
    %v265 = vmul.f32 %v210, %v232
    %v266 = vmul.f32 %v211, %v236
    %v268 = vlaneseq
    %v269 = vshrl.u32 %v268, 7
    %v270 = vsub.s32 0, %v269
    %v271 = vrot.slane %v66, %v270
    %v272 = vlaneseq
    %v273 = vshrl.u32 %v272, 7
    %v274 = vsub.s32 1, %v273
    %v275 = vrot.slane %v66, %v274
    %v276 = vlaneseq
    %v277 = vshrl.u32 %v276, 7
    %v278 = vsub.s32 2, %v277
    %v279 = vrot.slane %v66, %v278
    %v280 = vlaneseq
    %v281 = vshrl.u32 %v280, 7
    %v282 = vsub.s32 3, %v281
    %v283 = vrot.slane %v66, %v282
    %v284 = vlaneseq
    %v285 = vshrl.u32 %v284, 7
    %v286 = vsub.s32 4, %v285
    %v287 = vrot.slane %v66, %v286
    %v288 = vlaneseq
    %v289 = vshrl.u32 %v288, 7
    %v290 = vsub.s32 5, %v289
    %v291 = vrot.slane %v66, %v290
    %v298 = vadd.f32 %v243, %v271
    %v299 = vadd.f32 %v244, %v275
    %v300 = vadd.f32 %v245, %v279
    %v301 = vadd.f32 %v246, %v283
    %v302 = vadd.f32 %v247, %v287
    %v303 = vadd.f32 %v248, %v291
    %v304 = vadd.f32 %v249, %v271
    %v305 = vadd.f32 %v250, %v275
    %v306 = vadd.f32 %v251, %v279
    %v307 = vadd.f32 %v252, %v283
    %v308 = vadd.f32 %v253, %v287
    %v309 = vadd.f32 %v254, %v291
    %v310 = vadd.f32 %v255, %v271
    %v311 = vadd.f32 %v256, %v275
    %v312 = vadd.f32 %v257, %v279
    %v313 = vadd.f32 %v258, %v283
    %v314 = vadd.f32 %v259, %v287
    %v315 = vadd.f32 %v260, %v291
    %v316 = vadd.f32 %v261, %v271
    %v317 = vadd.f32 %v262, %v275
    %v318 = vadd.f32 %v263, %v279
    %v319 = vadd.f32 %v264, %v283
    %v320 = vadd.f32 %v265, %v287
    %v321 = vadd.f32 %v266, %v291
    %v322 = vpack.c.bf16 %v304, %v298
    %v323 = vpack.c.bf16 %v305, %v299
    %v324 = vpack.c.bf16 %v306, %v300
    %v325 = vpack.c.bf16 %v307, %v301
    %v326 = vpack.c.bf16 %v308, %v302
    %v327 = vpack.c.bf16 %v309, %v303
    %v328 = vpack.c.bf16 %v316, %v310
    %v329 = vpack.c.bf16 %v317, %v311
    %v330 = vpack.c.bf16 %v318, %v312
    %v331 = vpack.c.bf16 %v319, %v313
    %v332 = vpack.c.bf16 %v320, %v314
    %v333 = vpack.c.bf16 %v321, %v315
    %v346 = vunpack.c.l.b16 %v322
    %v347 = vunpack.c.l.b16 %v323
    %v348 = vunpack.c.l.b16 %v324
    %v349 = vunpack.c.l.b16 %v325
    %v350 = vunpack.c.l.b16 %v326
    %v351 = vunpack.c.l.b16 %v327
    %v352 = vunpack.c.h.b16 %v322
    %v353 = vunpack.c.h.b16 %v323
    %v354 = vunpack.c.h.b16 %v324
    %v355 = vunpack.c.h.b16 %v325
    %v356 = vunpack.c.h.b16 %v326
    %v357 = vunpack.c.h.b16 %v327
    %v358 = vunpack.c.l.b16 %v328
    %v359 = vunpack.c.l.b16 %v329
    %v360 = vunpack.c.l.b16 %v330
    %v361 = vunpack.c.l.b16 %v331
    %v362 = vunpack.c.l.b16 %v332
    %v363 = vunpack.c.l.b16 %v333
    %v364 = vunpack.c.h.b16 %v328
    %v365 = vunpack.c.h.b16 %v329
    %v366 = vunpack.c.h.b16 %v330
    %v367 = vunpack.c.h.b16 %v331
    %v368 = vunpack.c.h.b16 %v332
    %v369 = vunpack.c.h.b16 %v333
    %v370 = vpack.c.b16 %v347, %v346
    %v371 = vpack.c.b16 %v349, %v348
    %v372 = vpack.c.b16 %v351, %v350
    %v373 = vpack.c.b16 %v353, %v352
    %v374 = vpack.c.b16 %v355, %v354
    %v375 = vpack.c.b16 %v357, %v356
    %v376 = vpack.c.b16 %v359, %v358
    %v377 = vpack.c.b16 %v361, %v360
    %v378 = vpack.c.b16 %v363, %v362
    %v379 = vpack.c.b16 %v365, %v364
    %v380 = vpack.c.b16 %v367, %v366
    %v381 = vpack.c.b16 %v369, %v368
    %394 = vst [vmem:[#allocation7] sm:$0xff] %v370
    %395 = vst [vmem:[#allocation7 + $0x8] sm:$0xff] %v371
    %396 = vst [vmem:[#allocation7 + $0x10] sm:$0xff] %v372
    %397 = vst [vmem:[#allocation7 + $0x18] sm:$0xff] %v373
    %398 = vst [vmem:[#allocation7 + $0x20] sm:$0xff] %v374
    %399 = vst [vmem:[#allocation7 + $0x28] sm:$0xff] %v375
    %400 = vst [vmem:[#allocation7 + $0x30] sm:$0xff] %v376
    %401 = vst [vmem:[#allocation7 + $0x38] sm:$0xff] %v377
    %402 = vst [vmem:[#allocation7 + $0x40] sm:$0xff] %v378
    %403 = vst [vmem:[#allocation7 + $0x48] sm:$0xff] %v379
    %404 = vst [vmem:[#allocation7 + $0x50] sm:$0xff] %v380
    %405 = vst [vmem:[#allocation7 + $0x58] sm:$0xff] %v381
    // Predicated region
    $region22: #{tpu_custom_call.1} parent=1 // pred_check
      _
    $region23: #{tpu_custom_call.1} parent=1 // pred_check_branch
      %407 = sbr.rel (0) target = $region25
    $region24: #{tpu_custom_call.1} parent=1 // pred_region
      %s409 = ssub.s32 1536, 1536
      %410 = vsyncadd [#allocation4], %s409
      %s411 = sshll.u32 [#allocation7], 4
      %s412 = int_to_ptr.vmem [resolvable:$true] %s411
      %417 = dma.vmem_to_hbm [thread:$0]  %s412, 1536, %s3, [#allocation4], 384, 384, 24
    $region25: #{tpu_custom_call.1} parent=1 // pred_fallthru
      _
    // Predicated region
    $region26: #{tpu_custom_call.1} parent=1 // pred_check
      _
    $region27: #{tpu_custom_call.1} parent=1 // pred_check_branch
      %419 = sbr.rel (0) target = $region29
    $region28: #{tpu_custom_call.1} parent=1 // pred_region
      %420 = dma.done [#allocation4], 1536
    $region29: #{tpu_custom_call.1} parent=1 // pred_fallthru
      _
    %421 = vsyncpa [#allocation3], 1
    %422 = vsyncpa [#allocation6], 1
    %423 = vsyncpa [#allocation4], 1

</llo_original>
